<compile_context>
chip_gen: v7x
topology: tpu7x:2x2x1
jax: 0.10.0
libtpu: 0.0.40
codegen_flags: <defaults>
</compile_context>

<pallas_src>
import functools
import math

import jax
import jax.numpy as jnp
from jax.experimental import pallas as pl
from jax.experimental.pallas import tpu as pltpu

ATOM_FEATURE_DIMS = [119, 4, 12, 12, 10, 6, 6, 2, 2]   # get_atom_feature_dims()
BOND_FEATURE_DIMS = [5, 6, 2]                           # get_bond_feature_dims()
BN_EPS = 1e-5
BN_SCALE = float(1.0 / math.sqrt(1.0 + BN_EPS))         # eval-mode BatchNorm1d
GEN_EPS = 1e-7
LANE = 128

VMEM = pltpu.MemorySpace.VMEM


def _ceil_lane(d):
    return ((d + LANE - 1) // LANE) * LANE


def _pick_tile(n, cap):
    """Largest power-of-two tile <= cap that divides n; fallback: whole n."""
    if n <= cap:
        return n
    t = cap
    while t >= 8:
        if n % t == 0:
            return t
        t //= 2
    return n


# ----------------------------------------------------------------------------
# Pallas kernels
# ----------------------------------------------------------------------------
def _mlp5_kernel(x_ref, w0, b0, w1, b1, w2, b2, w3, b3, w4, b4, o_ref):
    """Fused GENConv MLP: 5x (Linear [-> BN -> ReLU]); bf16 MXU, f32 epilogue."""
    y = x_ref[...]
    ws = (w0, w1, w2, w3, w4)
    bs = (b0, b1, b2, b3, b4)
    for li in range(5):
        y = jnp.dot(y.astype(jnp.bfloat16), ws[li][...],
                    preferred_element_type=jnp.float32)
        y = y + bs[li][...]
        if li < 4:
            y = jnp.maximum(y * BN_SCALE, 0.0)
    o_ref[...] = y


def _mlp2_kernel(x_ref, w1_ref, b1_ref, w2_ref, b2_ref, o_ref):
    """Fused virtual-node MLP: 2x (Linear -> BN -> ReLU)."""
    y = x_ref[...]
    for w_r, b_r in ((w1_ref, b1_ref), (w2_ref, b2_ref)):
        y = jnp.dot(y.astype(jnp.bfloat16), w_r[...],
                    preferred_element_type=jnp.float32)
        y = jnp.maximum((y + b_r[...]) * BN_SCALE, 0.0)
    o_ref[...] = y


def _dagnn_kernel(a_ref, x_ref, w_ref, b_ref, o_ref, cur_ref, nxt_ref, acc_ref):
    """K propagation steps of out += sigmoid(x_k . w + b) * x_k, x_{k+1} = A x_k.

    grid = (K, row_blocks). A streamed as bf16 (tm, N) row blocks; cur/nxt (bf16)
    and acc (f32) are persistent (N, Dp) VMEM scratch. Output written once at end.
    """
    k = pl.program_id(0)
    i = pl.program_id(1)
    K = pl.num_programs(0)
    nblk = pl.num_programs(1)
    tm = a_ref.shape[0]

    w_row = w_ref[...]                       # (1, Dp) f32
    b = b_ref[...]                           # (1, 1)  f32

    @pl.when(jnp.logical_and(k == 0, i == 0))
    def _():
        x = x_ref[...]
        cur_ref[...] = x.astype(cur_ref.dtype)
        r = jax.nn.sigmoid(jnp.sum(x * w_row, axis=-1, keepdims=True) + b)
        acc_ref[...] = r * x

    # x_{k+1} rows for this block (MXU bf16, f32 accum)
    new = jnp.dot(a_ref[...], cur_ref[...], preferred_element_type=jnp.float32)
    # retain() as a VPU/XLU lane reduction (not a 1-column matmul)
    r = jax.nn.sigmoid(jnp.sum(new * w_row, axis=-1, keepdims=True) + b)

    row0 = i * tm
    if tm % 8 == 0:
        row0 = pl.multiple_of(row0, 8)
    sl = pl.ds(row0, tm)
    acc_ref[sl, :] = acc_ref[sl, :] + r * new
    nxt_ref[sl, :] = new.astype(nxt_ref.dtype)

    @pl.when(i == nblk - 1)
    def _():
        cur_ref[...] = nxt_ref[...]

    @pl.when(jnp.logical_and(k == K - 1, i == nblk - 1))
    def _():
        o_ref[...] = acc_ref[...]


def _distmax_kernel(xr_ref, xc_ref, w_ref, b_ref, br_ref, bc_ref,
                    dpred_ref, mask_ref, *, relu_out, d_chunk):
    """One (tm, tn) output block of d_pred = Linear(max(x_i, x_j)), masked."""
    xr = xr_ref[...]                         # (tm, Dp) f32
    xc = xc_ref[...]                         # (tn, Dp) f32
    w = w_ref[...]                           # (1, Dp)  f32
    tm, dp = xr.shape
    tn = xc.shape[0]

    acc = jnp.zeros((tm, tn), jnp.float32)
    for c in range(dp // d_chunk):           # chunked over features: no (tm,tn,Dp) temp
        sl = slice(c * d_chunk, (c + 1) * d_chunk)
        pm = jnp.maximum(xr[:, None, sl], xc[None, :, sl])      # (tm, tn, dc)
        acc = acc + jnp.sum(pm * w[:, sl][None, :, :], axis=-1)  # (tm, tn)
    d = acc + b_ref[...]

    br = br_ref[...]                         # (tm, 1) int32
    bc = bc_ref[...]                         # (1, tn) int32
    i = pl.program_id(0)
    j = pl.program_id(1)
    rowg = i * tm + jax.lax.broadcasted_iota(jnp.int32, (tm, tn), 0)
    colg = j * tn + jax.lax.broadcasted_iota(jnp.int32, (tm, tn), 1)
    valid = jnp.logical_and(br == bc, rowg != colg)

    md = jnp.where(valid, d, 0.0)
    if relu_out:
        md = jnp.maximum(md, 0.0)
    dpred_ref[...] = md
    mask_ref[...] = valid.astype(jnp.float32)


# ----------------------------------------------------------------------------
# Wrappers (pallas_call sites)
# ----------------------------------------------------------------------------
def genconv_mlp(p, y):
    m, din = y.shape
    dout = p["mlp_w"][4].shape[1]
    tm = _pick_tile(m, 512)
    grid = (pl.cdiv(m, tm),)

    in_specs = [pl.BlockSpec((tm, din), lambda i: (i, 0))]
    args = [y]
    for li in range(5):
        w, b = p["mlp_w"][li], p["mlp_b"][li]
        in_specs.append(pl.BlockSpec(w.shape, lambda i: (0, 0)))
        in_specs.append(pl.BlockSpec(b.shape, lambda i: (0, 0)))
        args.extend([w, b])

    return pl.pallas_call(
        _mlp5_kernel,
        grid=grid,
        in_specs=in_specs,
        out_specs=pl.BlockSpec((tm, dout), lambda i: (i, 0)),
        out_shape=jax.ShapeDtypeStruct((m, dout), jnp.float32),
        compiler_params=pltpu.CompilerParams(
            dimension_semantics=("parallel",)),
    )(*args)


def vn_mlp(p, v):
    m, dp = v.shape
    return pl.pallas_call(
        _mlp2_kernel,
        out_shape=jax.ShapeDtypeStruct((m, dp), jnp.float32),
        in_specs=[pl.BlockSpec(memory_space=VMEM)] * 5,
        out_specs=pl.BlockSpec(memory_space=VMEM),
    )(v, p["w1"], p["b1"], p["w2"], p["b2"])


def genconv(p, h, src, dst, edge_attr, num_nodes):
    """GENConv(aggr='softmax', t learnable, MLP num_layers=5, norm='batch')."""
    msg = jax.nn.relu(h[src] + edge_attr) + GEN_EPS                       # (E, Dp)
    logits = msg * p["t"]
    seg_max = jax.ops.segment_max(logits, dst, num_segments=num_nodes)
    seg_max = jnp.where(jnp.isfinite(seg_max), seg_max, 0.0)
    ex = jnp.exp(logits - seg_max[dst])
    denom = jax.ops.segment_sum(ex, dst, num_segments=num_nodes)
    alpha = ex / jnp.maximum(denom[dst], 1e-16)
    out = jax.ops.segment_sum(msg * alpha, dst, num_segments=num_nodes)   # (N, Dp)
    out = out + h
    return genconv_mlp(p, out)


def deepgcn_layer(p, h, src, dst, edge_attr, num_nodes):
    """DeepGCNLayer block='res+', dropout=0:  x + conv(relu(bn(x)))."""
    h2 = jnp.maximum(h * BN_SCALE, 0.0)
    h2 = genconv(p, h2, src, dst, edge_attr, num_nodes)
    return h + h2


def dagnn(p, h, src, dst, num_nodes, K=5):
    # gcn_norm (self loops + symmetric normalization) -> dense normalized adjacency
    loop = jnp.arange(num_nodes, dtype=src.dtype)
    s = jnp.concatenate([src, loop])
    t = jnp.concatenate([dst, loop])
    ew = jnp.ones(s.shape[0], jnp.float32)
    deg = jax.ops.segment_sum(ew, t, num_segments=num_nodes)
    dis = jnp.where(deg > 0, jax.lax.rsqrt(deg), 0.0)
    norm = dis[s] * ew * dis[t]
    a = jnp.zeros((num_nodes, num_nodes), jnp.float32).at[t, s].add(norm)
    a = a.astype(jnp.bfloat16)                       # halves DMA, native MXU rate

    n, dp = h.shape
    tm = _pick_tile(n, 256)                          # exact divisor (scratch writes)
    nblk = n // tm
    grid = (K, nblk)

    return pl.pallas_call(
        _dagnn_kernel,
        grid=grid,
        in_specs=[
            pl.BlockSpec((tm, n), lambda k, i: (i, 0)),   # A row block (streamed)
            pl.BlockSpec((n, dp), lambda k, i: (0, 0)),   # x (resident)
            pl.BlockSpec((1, dp), lambda k, i: (0, 0)),   # proj weight row
            pl.BlockSpec((1, 1), lambda k, i: (0, 0)),    # proj bias
        ],
        out_specs=pl.BlockSpec((n, dp), lambda k, i: (0, 0)),
        out_shape=jax.ShapeDtypeStruct((n, dp), jnp.float32),
        scratch_shapes=[
            pltpu.VMEM((n, dp), jnp.bfloat16),   # cur  (x_k)
            pltpu.VMEM((n, dp), jnp.bfloat16),   # next (x_{k+1})
            pltpu.VMEM((n, dp), jnp.float32),    # out accumulator
        ],
        compiler_params=pltpu.CompilerParams(
            dimension_semantics=("arbitrary", "arbitrary"),
            vmem_limit_bytes=64 * 1024 * 1024),
    )(a, h, p["proj_w_row"], p["proj_b"])


def distmax(p, xs, batch, num_graphs, train=False):
    n, dp = xs.shape
    t = _pick_tile(n, 128)
    grid = (pl.cdiv(n, t), pl.cdiv(n, t))
    d_chunk = 64 if dp % 64 == 0 else dp

    brow = batch.reshape(n, 1).astype(jnp.int32)
    bcol = batch.reshape(1, n).astype(jnp.int32)

    dpred, mask = pl.pallas_call(
        functools.partial(_distmax_kernel, relu_out=not train, d_chunk=d_chunk),
        grid=grid,
        in_specs=[
            pl.BlockSpec((t, dp), lambda i, j: (i, 0)),   # xs rows
            pl.BlockSpec((t, dp), lambda i, j: (j, 0)),   # xs cols
            pl.BlockSpec((1, dp), lambda i, j: (0, 0)),   # fc weight
            pl.BlockSpec((1, 1), lambda i, j: (0, 0)),    # fc bias
            pl.BlockSpec((t, 1), lambda i, j: (i, 0)),    # batch ids (rows)
            pl.BlockSpec((1, t), lambda i, j: (0, j)),    # batch ids (cols)
        ],
        out_specs=(pl.BlockSpec((t, t), lambda i, j: (i, j)),
                   pl.BlockSpec((t, t), lambda i, j: (i, j))),
        out_shape=(jax.ShapeDtypeStruct((n, n), jnp.float32),
                   jax.ShapeDtypeStruct((n, n), jnp.float32)),
        compiler_params=pltpu.CompilerParams(
            dimension_semantics=("parallel", "parallel"),
            vmem_limit_bytes=64 * 1024 * 1024),
    )(xs, xs, p["fc_w"], p["fc_b"], brow, bcol)

    # count = sum(mask) computed analytically: per-graph n_g*(n_g-1)  (no N^2 re-read)
    ones = jnp.ones((n,), jnp.float32)
    n_per = jax.ops.segment_sum(ones, batch, num_segments=num_graphs)
    count = jnp.sum(n_per * (n_per - 1.0))
    return dpred, mask, count


# ----------------------------------------------------------------------------
# Full forward
# ----------------------------------------------------------------------------
def deepergcn_dagnn_dist_forward(params, x, edge_index, edge_attr, batch,
                                 num_graphs, key, train=False):
    num_nodes = x.shape[0]
    emb_dim = params["emb_dim"]
    dp = params["emb_dim_pad"]
    pad = dp - emb_dim
    src, dst = edge_index[0], edge_index[1]

    # Atom / Bond encoders (embedding-sum); tables are zero-padded to dp lanes
    ea = sum(params["bond_emb"][i][edge_attr[:, i]] for i in range(edge_attr.shape[1]))
    h = sum(params["atom_emb"][i][x[:, i]] for i in range(x.shape[1]))

    # virtual node embedding (init constant 0)
    vn = jnp.zeros((num_graphs, dp), jnp.float32)
    h = h + vn[batch]

    # in-forward Normal(0,1) noise on the real lanes (jax.random replacement)
    k1, k2 = jax.random.split(key)
    h = h + jnp.pad(jax.random.normal(k1, (num_nodes, emb_dim), jnp.float32),
                    ((0, 0), (0, pad)))
    ea = ea + jnp.pad(jax.random.normal(k2, (ea.shape[0], emb_dim), jnp.float32),
                      ((0, 0), (0, pad)))

    layers = params["layers"]
    h = genconv(layers[0], h, src, dst, ea, num_nodes)
    for i in range(1, len(layers)):
        h = deepgcn_layer(layers[i], h, src, dst, ea, num_nodes)
        vn_temp = jax.ops.segment_sum(h, batch, num_segments=num_graphs) + vn
        vn = vn_mlp(params["vn_mlps"][i - 1], vn_temp)   # dropout (eval) -> identity
        h = h + vn[batch]

    # layers[0].act(layers[0].norm(h)), dropout p=0
    h = jnp.maximum(h * BN_SCALE, 0.0)
    h = h + vn[batch]
    h = dagnn(params["dagnn"], h, src, dst, num_nodes, K=5)

    xs = h   # JK == 'last'
    return distmax(params["dist"], xs, batch, num_graphs, train=train)


# ----------------------------------------------------------------------------
# Deterministic parameter init (zero-padded to lane-dense widths)
# ----------------------------------------------------------------------------
def init_params(seed, num_layers, emb_dim):
    base = jax.random.PRNGKey(seed)
    counter = [0]

    def nrm(shape, scale=0.1):
        counter[0] += 1
        return scale * jax.random.normal(jax.random.fold_in(base, counter[0]),
                                         shape, jnp.float32)

    def pad2(a, rows, cols):
        r, c = a.shape
        return jnp.pad(a, ((0, rows - r), (0, cols - c)))

    dpad = _ceil_lane(emb_dim)
    hpad = _ceil_lane(2 * emb_dim)

    params = {"emb_dim": emb_dim, "emb_dim_pad": dpad}
    params["atom_emb"] = [pad2(nrm((d, emb_dim)), d, dpad) for d in ATOM_FEATURE_DIMS]
    params["bond_emb"] = [pad2(nrm((d, emb_dim)), d, dpad) for d in BOND_FEATURE_DIMS]

    def init_genconv():
        dims = [emb_dim] + [2 * emb_dim] * 4 + [emb_dim]    # GENConv MLP, num_layers=5
        dimsp = [dpad] + [hpad] * 4 + [dpad]
        mlp_w = [pad2(nrm((dims[i], dims[i + 1])), dimsp[i], dimsp[i + 1])
                 .astype(jnp.bfloat16) for i in range(5)]
        mlp_b = [jnp.zeros((1, dimsp[i + 1]), jnp.float32) for i in range(5)]
        return {"t": jnp.float32(1.0), "mlp_w": mlp_w, "mlp_b": mlp_b}

    params["layers"] = [init_genconv() for _ in range(num_layers)]
    params["vn_mlps"] = [
        {"w1": pad2(nrm((emb_dim, emb_dim)), dpad, dpad).astype(jnp.bfloat16),
         "b1": jnp.zeros((1, dpad), jnp.float32),
         "w2": pad2(nrm((emb_dim, emb_dim)), dpad, dpad).astype(jnp.bfloat16),
         "b2": jnp.zeros((1, dpad), jnp.float32)}
        for _ in range(num_layers - 1)
    ]
    params["dagnn"] = {"proj_w_row": pad2(nrm((1, emb_dim)), 1, dpad),
                       "proj_b": jnp.zeros((1, 1), jnp.float32)}
    params["dist"] = {"fc_w": pad2(nrm((1, emb_dim)), 1, dpad),
                      "fc_b": jnp.zeros((1, 1), jnp.float32)}
    return params


# ----------------------------------------------------------------------------
if __name__ == "__main__":
    num_layers, emb_dim = 3, 32
    n_per_graph, num_graphs = 8, 2
    N = n_per_graph * num_graphs

    params = init_params(0, num_layers, emb_dim)

    key = jax.random.PRNGKey(0)
    kx, ke, kr = jax.random.split(key, 3)

    # two small ring graphs, bidirectional edges
    src_list, dst_list = [], []
    for g in range(num_graphs):
        base = g * n_per_graph
        for i in range(n_per_graph):
            a, b = base + i, base + (i + 1) % n_per_graph
            src_list += [a, b]
            dst_list += [b, a]
    edge_index = jnp.array([src_list, dst_list], dtype=jnp.int32)
    E = edge_index.shape[1]

    x = jnp.stack(
        [jax.random.randint(jax.random.fold_in(kx, i), (N,), 0, d)
         for i, d in enumerate(ATOM_FEATURE_DIMS)], axis=1).astype(jnp.int32)
    edge_attr = jnp.stack(
        [jax.random.randint(jax.random.fold_in(ke, i), (E,), 0, d)
         for i, d in enumerate(BOND_FEATURE_DIMS)], axis=1).astype(jnp.int32)
    batch = jnp.repeat(jnp.arange(num_graphs, dtype=jnp.int32), n_per_graph)

    mask_d_pred, mask, count = deepergcn_dagnn_dist_forward(
        params, x, edge_index, edge_attr, batch, num_graphs, kr, train=False)
    jax.block_until_ready((mask_d_pred, mask, count))

    assert mask_d_pred.shape == (N, N) and mask.shape == (N, N)
    print("KERNEL_OK")
</pallas_src>

<mosaic_0001>
module attributes {stable_mosaic.version = 11 : i64} {
  func.func @_mlp5_kernel(%arg0: i32, %arg1: memref<16x128xf32, #tpu.memory_space<vmem>>, %arg2: memref<128x128xbf16, #tpu.memory_space<vmem>>, %arg3: memref<1x128xf32, #tpu.memory_space<vmem>>, %arg4: memref<128x128xbf16, #tpu.memory_space<vmem>>, %arg5: memref<1x128xf32, #tpu.memory_space<vmem>>, %arg6: memref<128x128xbf16, #tpu.memory_space<vmem>>, %arg7: memref<1x128xf32, #tpu.memory_space<vmem>>, %arg8: memref<128x128xbf16, #tpu.memory_space<vmem>>, %arg9: memref<1x128xf32, #tpu.memory_space<vmem>>, %arg10: memref<128x128xbf16, #tpu.memory_space<vmem>>, %arg11: memref<1x128xf32, #tpu.memory_space<vmem>>, %arg12: memref<16x128xf32, #tpu.memory_space<vmem>>) attributes {dimension_semantics = [#tpu.dimension_semantics<parallel>], iteration_bounds = array<i64: 1>, scalar_prefetch = 0 : i64, scratch_operands = 0 : i64, tpu.core_type = #tpu.core_type<tc>, window_params = [{transform_indices = @transform_0, window_bounds = array<i64: 16, 128>}, {pipeline_mode = #tpu.pipeline_mode<synchronous>, transform_indices = @transform_1, window_bounds = array<i64: 128, 128>}, {pipeline_mode = #tpu.pipeline_mode<synchronous>, transform_indices = @transform_2, window_bounds = array<i64: 1, 128>}, {pipeline_mode = #tpu.pipeline_mode<synchronous>, transform_indices = @transform_3, window_bounds = array<i64: 128, 128>}, {pipeline_mode = #tpu.pipeline_mode<synchronous>, transform_indices = @transform_4, window_bounds = array<i64: 1, 128>}, {pipeline_mode = #tpu.pipeline_mode<synchronous>, transform_indices = @transform_5, window_bounds = array<i64: 128, 128>}, {pipeline_mode = #tpu.pipeline_mode<synchronous>, transform_indices = @transform_6, window_bounds = array<i64: 1, 128>}, {pipeline_mode = #tpu.pipeline_mode<synchronous>, transform_indices = @transform_7, window_bounds = array<i64: 128, 128>}, {pipeline_mode = #tpu.pipeline_mode<synchronous>, transform_indices = @transform_8, window_bounds = array<i64: 1, 128>}, {pipeline_mode = #tpu.pipeline_mode<synchronous>, transform_indices = @transform_9, window_bounds = array<i64: 128, 128>}, {pipeline_mode = #tpu.pipeline_mode<synchronous>, transform_indices = @transform_10, window_bounds = array<i64: 1, 128>}, {transform_indices = @transform_11, window_bounds = array<i64: 16, 128>}]} {
    %c0 = arith.constant 0 : index
    %c0_0 = arith.constant 0 : index
    %0 = vector.load %arg1[%c0, %c0_0] : memref<16x128xf32, #tpu.memory_space<vmem>>, vector<16x128xf32>
    %1 = arith.truncf %0 : vector<16x128xf32> to vector<16x128xbf16>
    %c0_1 = arith.constant 0 : index
    %c0_2 = arith.constant 0 : index
    %2 = vector.load %arg2[%c0_1, %c0_2] : memref<128x128xbf16, #tpu.memory_space<vmem>>, vector<128x128xbf16>
    %cst = arith.constant dense<0.000000e+00> : vector<16x128xf32>
    %3 = tpu.matmul %1, %2, %cst {dimension_numbers = #tpu.dot_dimension_numbers<[1], [0], [0], [1], [0, 0, 1, 1], [], []>} : vector<16x128xbf16>, vector<128x128xbf16>, vector<16x128xf32> -> vector<16x128xf32>
    %c0_3 = arith.constant 0 : index
    %c0_4 = arith.constant 0 : index
    %4 = vector.load %arg3[%c0_3, %c0_4] : memref<1x128xf32, #tpu.memory_space<vmem>>, vector<1x128xf32>
    %5 = vector.broadcast %4 : vector<1x128xf32> to vector<16x128xf32>
    %6 = arith.addf %3, %5 : vector<16x128xf32>
    %cst_5 = arith.constant 0.999994993 : f32
    %7 = vector.broadcast %cst_5 : f32 to vector<16x128xf32>
    %8 = arith.mulf %6, %7 : vector<16x128xf32>
    %cst_6 = arith.constant 0.000000e+00 : f32
    %9 = vector.broadcast %cst_6 : f32 to vector<16x128xf32>
    %10 = arith.maximumf %8, %9 : vector<16x128xf32>
    %11 = arith.truncf %10 : vector<16x128xf32> to vector<16x128xbf16>
    %c0_7 = arith.constant 0 : index
    %c0_8 = arith.constant 0 : index
    %12 = vector.load %arg4[%c0_7, %c0_8] : memref<128x128xbf16, #tpu.memory_space<vmem>>, vector<128x128xbf16>
    %cst_9 = arith.constant dense<0.000000e+00> : vector<16x128xf32>
    %13 = tpu.matmul %11, %12, %cst_9 {dimension_numbers = #tpu.dot_dimension_numbers<[1], [0], [0], [1], [0, 0, 1, 1], [], []>} : vector<16x128xbf16>, vector<128x128xbf16>, vector<16x128xf32> -> vector<16x128xf32>
    %c0_10 = arith.constant 0 : index
    %c0_11 = arith.constant 0 : index
    %14 = vector.load %arg5[%c0_10, %c0_11] : memref<1x128xf32, #tpu.memory_space<vmem>>, vector<1x128xf32>
    %15 = vector.broadcast %14 : vector<1x128xf32> to vector<16x128xf32>
    %16 = arith.addf %13, %15 : vector<16x128xf32>
    %cst_12 = arith.constant 0.999994993 : f32
    %17 = vector.broadcast %cst_12 : f32 to vector<16x128xf32>
    %18 = arith.mulf %16, %17 : vector<16x128xf32>
    %cst_13 = arith.constant 0.000000e+00 : f32
    %19 = vector.broadcast %cst_13 : f32 to vector<16x128xf32>
    %20 = arith.maximumf %18, %19 : vector<16x128xf32>
    %21 = arith.truncf %20 : vector<16x128xf32> to vector<16x128xbf16>
    %c0_14 = arith.constant 0 : index
    %c0_15 = arith.constant 0 : index
    %22 = vector.load %arg6[%c0_14, %c0_15] : memref<128x128xbf16, #tpu.memory_space<vmem>>, vector<128x128xbf16>
    %cst_16 = arith.constant dense<0.000000e+00> : vector<16x128xf32>
    %23 = tpu.matmul %21, %22, %cst_16 {dimension_numbers = #tpu.dot_dimension_numbers<[1], [0], [0], [1], [0, 0, 1, 1], [], []>} : vector<16x128xbf16>, vector<128x128xbf16>, vector<16x128xf32> -> vector<16x128xf32>
    %c0_17 = arith.constant 0 : index
    %c0_18 = arith.constant 0 : index
    %24 = vector.load %arg7[%c0_17, %c0_18] : memref<1x128xf32, #tpu.memory_space<vmem>>, vector<1x128xf32>
    %25 = vector.broadcast %24 : vector<1x128xf32> to vector<16x128xf32>
    %26 = arith.addf %23, %25 : vector<16x128xf32>
    %cst_19 = arith.constant 0.999994993 : f32
    %27 = vector.broadcast %cst_19 : f32 to vector<16x128xf32>
    %28 = arith.mulf %26, %27 : vector<16x128xf32>
    %cst_20 = arith.constant 0.000000e+00 : f32
    %29 = vector.broadcast %cst_20 : f32 to vector<16x128xf32>
    %30 = arith.maximumf %28, %29 : vector<16x128xf32>
    %31 = arith.truncf %30 : vector<16x128xf32> to vector<16x128xbf16>
    %c0_21 = arith.constant 0 : index
    %c0_22 = arith.constant 0 : index
    %32 = vector.load %arg8[%c0_21, %c0_22] : memref<128x128xbf16, #tpu.memory_space<vmem>>, vector<128x128xbf16>
    %cst_23 = arith.constant dense<0.000000e+00> : vector<16x128xf32>
    %33 = tpu.matmul %31, %32, %cst_23 {dimension_numbers = #tpu.dot_dimension_numbers<[1], [0], [0], [1], [0, 0, 1, 1], [], []>} : vector<16x128xbf16>, vector<128x128xbf16>, vector<16x128xf32> -> vector<16x128xf32>
    %c0_24 = arith.constant 0 : index
    %c0_25 = arith.constant 0 : index
    %34 = vector.load %arg9[%c0_24, %c0_25] : memref<1x128xf32, #tpu.memory_space<vmem>>, vector<1x128xf32>
    %35 = vector.broadcast %34 : vector<1x128xf32> to vector<16x128xf32>
    %36 = arith.addf %33, %35 : vector<16x128xf32>
    %cst_26 = arith.constant 0.999994993 : f32
    %37 = vector.broadcast %cst_26 : f32 to vector<16x128xf32>
    %38 = arith.mulf %36, %37 : vector<16x128xf32>
    %cst_27 = arith.constant 0.000000e+00 : f32
    %39 = vector.broadcast %cst_27 : f32 to vector<16x128xf32>
    %40 = arith.maximumf %38, %39 : vector<16x128xf32>
    %41 = arith.truncf %40 : vector<16x128xf32> to vector<16x128xbf16>
    %c0_28 = arith.constant 0 : index
    %c0_29 = arith.constant 0 : index
    %42 = vector.load %arg10[%c0_28, %c0_29] : memref<128x128xbf16, #tpu.memory_space<vmem>>, vector<128x128xbf16>
    %cst_30 = arith.constant dense<0.000000e+00> : vector<16x128xf32>
    %43 = tpu.matmul %41, %42, %cst_30 {dimension_numbers = #tpu.dot_dimension_numbers<[1], [0], [0], [1], [0, 0, 1, 1], [], []>} : vector<16x128xbf16>, vector<128x128xbf16>, vector<16x128xf32> -> vector<16x128xf32>
    %c0_31 = arith.constant 0 : index
    %c0_32 = arith.constant 0 : index
    %44 = vector.load %arg11[%c0_31, %c0_32] : memref<1x128xf32, #tpu.memory_space<vmem>>, vector<1x128xf32>
    %45 = vector.broadcast %44 : vector<1x128xf32> to vector<16x128xf32>
    %46 = arith.addf %43, %45 : vector<16x128xf32>
    %c0_33 = arith.constant 0 : index
    %c0_34 = arith.constant 0 : index
    %47 = vector.load %arg12[%c0_33, %c0_34] : memref<16x128xf32, #tpu.memory_space<vmem>>, vector<16x128xf32>
    tpu.vector_store %arg12[%c0_33, %c0_34], %46 {strides = array<i32>} : memref<16x128xf32, #tpu.memory_space<vmem>>, vector<16x128xf32>,
    return
  }
  func.func @transform_0(%arg0: i32) -> (i32, i32) {
    %c0_i32 = arith.constant 0 : i32
    %c0_i32_0 = arith.constant 0 : i32
    return %arg0, %c0_i32 : i32, i32
  }
  func.func @transform_1(%arg0: i32) -> (i32, i32) {
    %c0_i32 = arith.constant 0 : i32
    %c0_i32_0 = arith.constant 0 : i32
    %c0_i32_1 = arith.constant 0 : i32
    return %c0_i32, %c0_i32_0 : i32, i32
  }
  func.func @transform_2(%arg0: i32) -> (i32, i32) {
    %c0_i32 = arith.constant 0 : i32
    %c0_i32_0 = arith.constant 0 : i32
    %c0_i32_1 = arith.constant 0 : i32
    return %c0_i32, %c0_i32_0 : i32, i32
  }
  func.func @transform_3(%arg0: i32) -> (i32, i32) {
    %c0_i32 = arith.constant 0 : i32
    %c0_i32_0 = arith.constant 0 : i32
    %c0_i32_1 = arith.constant 0 : i32
    return %c0_i32, %c0_i32_0 : i32, i32
  }
  func.func @transform_4(%arg0: i32) -> (i32, i32) {
    %c0_i32 = arith.constant 0 : i32
    %c0_i32_0 = arith.constant 0 : i32
    %c0_i32_1 = arith.constant 0 : i32
    return %c0_i32, %c0_i32_0 : i32, i32
  }
  func.func @transform_5(%arg0: i32) -> (i32, i32) {
    %c0_i32 = arith.constant 0 : i32
    %c0_i32_0 = arith.constant 0 : i32
    %c0_i32_1 = arith.constant 0 : i32
    return %c0_i32, %c0_i32_0 : i32, i32
  }
  func.func @transform_6(%arg0: i32) -> (i32, i32) {
    %c0_i32 = arith.constant 0 : i32
    %c0_i32_0 = arith.constant 0 : i32
    %c0_i32_1 = arith.constant 0 : i32
    return %c0_i32, %c0_i32_0 : i32, i32
  }
  func.func @transform_7(%arg0: i32) -> (i32, i32) {
    %c0_i32 = arith.constant 0 : i32
    %c0_i32_0 = arith.constant 0 : i32
    %c0_i32_1 = arith.constant 0 : i32
    return %c0_i32, %c0_i32_0 : i32, i32
  }
  func.func @transform_8(%arg0: i32) -> (i32, i32) {
    %c0_i32 = arith.constant 0 : i32
    %c0_i32_0 = arith.constant 0 : i32
    %c0_i32_1 = arith.constant 0 : i32
    return %c0_i32, %c0_i32_0 : i32, i32
  }
  func.func @transform_9(%arg0: i32) -> (i32, i32) {
    %c0_i32 = arith.constant 0 : i32
    %c0_i32_0 = arith.constant 0 : i32
    %c0_i32_1 = arith.constant 0 : i32
    return %c0_i32, %c0_i32_0 : i32, i32
  }
  func.func @transform_10(%arg0: i32) -> (i32, i32) {
    %c0_i32 = arith.constant 0 : i32
    %c0_i32_0 = arith.constant 0 : i32
    %c0_i32_1 = arith.constant 0 : i32
    return %c0_i32, %c0_i32_0 : i32, i32
  }
  func.func @transform_11(%arg0: i32) -> (i32, i32) {
    %c0_i32 = arith.constant 0 : i32
    %c0_i32_0 = arith.constant 0 : i32
    return %arg0, %c0_i32 : i32, i32
  }
}

</mosaic_0001>

<llo_original>
// kernel: tpu_custom_call.1
$region0: #{tpu_custom_call.1}
  #allocation0 [shape = 'u32[]', space=smem, size = 0x4, offset = 0x4, fixed_abs, tag = 'smem constant byte address 0x4 - core index']
  #allocation1 [shape = 'u32[144,128]{1,0:T(1,128)}', space=vmem, size = 0x12000, scoped, tag = 'internal scratch']
  %s0 = inlined_call_operand.hbm [shape: f32[16,128], index: 0, kind: input, shape index: {}]
  %s1 = inlined_call_operand.hbm [shape: bf16[128,128], index: 1, kind: input, shape index: {}]
  %s2 = inlined_call_operand.vmem [shape: f32[1,128], index: 2, kind: input, shape index: {}]
  %s3 = inlined_call_operand.hbm [shape: bf16[128,128], index: 3, kind: input, shape index: {}]
  %s4 = inlined_call_operand.vmem [shape: f32[1,128], index: 4, kind: input, shape index: {}]
  %s5 = inlined_call_operand.hbm [shape: bf16[128,128], index: 5, kind: input, shape index: {}]
  %s6 = inlined_call_operand.vmem [shape: f32[1,128], index: 6, kind: input, shape index: {}]
  %s7 = inlined_call_operand.hbm [shape: bf16[128,128], index: 7, kind: input, shape index: {}]
  %s8 = inlined_call_operand.vmem [shape: f32[1,128], index: 8, kind: input, shape index: {}]
  %s9 = inlined_call_operand.hbm [shape: bf16[128,128], index: 9, kind: input, shape index: {}]
  %s10 = inlined_call_operand.vmem [shape: f32[1,128], index: 10, kind: input, shape index: {}]
  %s11 = inlined_call_operand.hbm [shape: f32[16,128], index: 11, kind: output, shape index: {}]
  %s12 = sld [smem:[#allocation0]]
  $region78: #{tpu_custom_call.1} parent=0
    _
  %s14 = ssub.s32 1, %s12
  %s15 = scalar_select 0, %s14, %s12
  $region1: #{tpu_custom_call.1} parent=0
    #allocation2 [shape = 'u8[8192]{0}', space=vmem, size = 0x2000, scoped, tag = 'input window, operand 0, single buffered']
    #allocation3 [shape = 's32[1]{0}', space=sflag, size = 0x4, scoped, tag = 'scoped memory for tpu_custom_call.1']
    #allocation4 [shape = 's32[1]{0}', space=sflag, size = 0x4, scoped, tag = 'scoped memory for tpu_custom_call.1']
    #allocation5 [shape = 'u8[32768]{0}', space=vmem, size = 0x8000, scoped, tag = 'input window, operand 1, single buffered']
    #allocation6 [shape = 's32[1]{0}', space=sflag, size = 0x4, scoped, tag = 'scoped memory for tpu_custom_call.1']
    #allocation7 [shape = 'u8[32768]{0}', space=vmem, size = 0x8000, scoped, tag = 'input window, operand 3, single buffered']
    #allocation8 [shape = 'u8[32768]{0}', space=vmem, size = 0x8000, scoped, tag = 'input window, operand 5, single buffered']
    #allocation9 [shape = 's32[1]{0}', space=sflag, size = 0x4, scoped, tag = 'scoped memory for tpu_custom_call.1']
    #allocation10 [shape = 'u8[32768]{0}', space=vmem, size = 0x8000, scoped, tag = 'input window, operand 7, single buffered']
    #allocation11 [shape = 'u8[32768]{0}', space=vmem, size = 0x8000, scoped, tag = 'input window, operand 9, single buffered']
    #allocation12 [shape = 's32[1]{0}', space=sflag, size = 0x4, scoped, tag = 'scoped memory for tpu_custom_call.1']
    #allocation13 [shape = 'u8[8192]{0}', space=vmem, size = 0x2000, scoped, tag = 'output window, operand 0, single buffered']
    %16 = vsyncpa [#allocation3], 0
    %17 = vsyncpa [#allocation6], 0
    %18 = vsyncpa [#allocation9], 0
    %19 = vsyncpa [#allocation12], 0
    %20 = vsyncpa [#allocation4], 0
    // Predicated region
    $region2: #{tpu_custom_call.1} parent=1 // pred_check
      _
    $region3: #{tpu_custom_call.1} parent=1 // pred_check_branch
      %22 = sbr.rel (0) target = $region5
    $region4: #{tpu_custom_call.1} parent=1 // pred_region
      %s24 = ssub.s32 256, 256
      %25 = vsyncadd [#allocation3], %s24
      %s26 = sshll.u32 [#allocation2], 4
      %s27 = int_to_ptr.vmem [resolvable:$true] %s26
      %32 = dma.hbm_to_vmem [thread:$0]  %s0, 256, %s27, [#allocation3], 128, 128, 8
    $region5: #{tpu_custom_call.1} parent=1 // pred_fallthru
      _
    // Predicated region
    $region6: #{tpu_custom_call.1} parent=1 // pred_check
      _
    $region7: #{tpu_custom_call.1} parent=1 // pred_check_branch
      %34 = sbr.rel (0) target = $region9
    $region8: #{tpu_custom_call.1} parent=1 // pred_region
      %s36 = ssub.s32 1024, 1024
      %37 = vsyncadd [#allocation6], %s36
      %s38 = sshll.u32 [#allocation5], 4
      %s39 = int_to_ptr.vmem [resolvable:$true] %s38
      %44 = dma.hbm_to_vmem [thread:$0]  %s1, 1024, %s39, [#allocation6], 64, 64, 4
    $region9: #{tpu_custom_call.1} parent=1 // pred_fallthru
      _
    // Predicated region
    $region10: #{tpu_custom_call.1} parent=1 // pred_check
      _
    $region11: #{tpu_custom_call.1} parent=1 // pred_check_branch
      %46 = sbr.rel (0) target = $region13
    $region12: #{tpu_custom_call.1} parent=1 // pred_region
      _
    $region13: #{tpu_custom_call.1} parent=1 // pred_fallthru
      _
    // Predicated region
    $region14: #{tpu_custom_call.1} parent=1 // pred_check
      _
    $region15: #{tpu_custom_call.1} parent=1 // pred_check_branch
      %48 = sbr.rel (0) target = $region17
    $region16: #{tpu_custom_call.1} parent=1 // pred_region
      %s50 = ssub.s32 1024, 1024
      %51 = vsyncadd [#allocation6], %s50
      %s52 = sshll.u32 [#allocation7], 4
      %s53 = int_to_ptr.vmem [resolvable:$true] %s52
      %58 = dma.hbm_to_vmem [thread:$0]  %s3, 1024, %s53, [#allocation6], 64, 64, 4
    $region17: #{tpu_custom_call.1} parent=1 // pred_fallthru
      _
    // Predicated region
    $region18: #{tpu_custom_call.1} parent=1 // pred_check
      _
    $region19: #{tpu_custom_call.1} parent=1 // pred_check_branch
      %60 = sbr.rel (0) target = $region21
    $region20: #{tpu_custom_call.1} parent=1 // pred_region
      _
    $region21: #{tpu_custom_call.1} parent=1 // pred_fallthru
      _
    // Predicated region
    $region22: #{tpu_custom_call.1} parent=1 // pred_check
      _
    $region23: #{tpu_custom_call.1} parent=1 // pred_check_branch
      %62 = sbr.rel (0) target = $region25
    $region24: #{tpu_custom_call.1} parent=1 // pred_region
      %s64 = ssub.s32 1024, 1024
      %65 = vsyncadd [#allocation9], %s64
      %s66 = sshll.u32 [#allocation8], 4
      %s67 = int_to_ptr.vmem [resolvable:$true] %s66
      %72 = dma.hbm_to_vmem [thread:$0]  %s5, 1024, %s67, [#allocation9], 64, 64, 4
    $region25: #{tpu_custom_call.1} parent=1 // pred_fallthru
      _
    // Predicated region
    $region26: #{tpu_custom_call.1} parent=1 // pred_check
      _
    $region27: #{tpu_custom_call.1} parent=1 // pred_check_branch
      %74 = sbr.rel (0) target = $region29
    $region28: #{tpu_custom_call.1} parent=1 // pred_region
      _
    $region29: #{tpu_custom_call.1} parent=1 // pred_fallthru
      _
    // Predicated region
    $region30: #{tpu_custom_call.1} parent=1 // pred_check
      _
    $region31: #{tpu_custom_call.1} parent=1 // pred_check_branch
      %76 = sbr.rel (0) target = $region33
    $region32: #{tpu_custom_call.1} parent=1 // pred_region
      %s78 = ssub.s32 1024, 1024
      %79 = vsyncadd [#allocation9], %s78
      %s80 = sshll.u32 [#allocation10], 4
      %s81 = int_to_ptr.vmem [resolvable:$true] %s80
      %86 = dma.hbm_to_vmem [thread:$0]  %s7, 1024, %s81, [#allocation9], 64, 64, 4
    $region33: #{tpu_custom_call.1} parent=1 // pred_fallthru
      _
    // Predicated region
    $region34: #{tpu_custom_call.1} parent=1 // pred_check
      _
    $region35: #{tpu_custom_call.1} parent=1 // pred_check_branch
      %88 = sbr.rel (0) target = $region37
    $region36: #{tpu_custom_call.1} parent=1 // pred_region
      _
    $region37: #{tpu_custom_call.1} parent=1 // pred_fallthru
      _
    // Predicated region
    $region38: #{tpu_custom_call.1} parent=1 // pred_check
      _
    $region39: #{tpu_custom_call.1} parent=1 // pred_check_branch
      %90 = sbr.rel (0) target = $region41
    $region40: #{tpu_custom_call.1} parent=1 // pred_region
      %s92 = ssub.s32 1024, 1024
      %93 = vsyncadd [#allocation12], %s92
      %s94 = sshll.u32 [#allocation11], 4
      %s95 = int_to_ptr.vmem [resolvable:$true] %s94
      %100 = dma.hbm_to_vmem [thread:$0]  %s9, 1024, %s95, [#allocation12], 64, 64, 4
    $region41: #{tpu_custom_call.1} parent=1 // pred_fallthru
      _
    // Predicated region
    $region42: #{tpu_custom_call.1} parent=1 // pred_check
      _
    $region43: #{tpu_custom_call.1} parent=1 // pred_check_branch
      %102 = sbr.rel (0) target = $region45
    $region44: #{tpu_custom_call.1} parent=1 // pred_region
      _
    $region45: #{tpu_custom_call.1} parent=1 // pred_fallthru
      _
    // Predicated region
    $region46: #{tpu_custom_call.1} parent=1 // pred_check
      _
    $region47: #{tpu_custom_call.1} parent=1 // pred_check_branch
      %104 = sbr.rel (0) target = $region49
    $region48: #{tpu_custom_call.1} parent=1 // pred_region
      %105 = dma.done [#allocation3], 256
    $region49: #{tpu_custom_call.1} parent=1 // pred_fallthru
      _
    // Predicated region
    $region50: #{tpu_custom_call.1} parent=1 // pred_check
      _
    $region51: #{tpu_custom_call.1} parent=1 // pred_check_branch
      %107 = sbr.rel (0) target = $region53
    $region52: #{tpu_custom_call.1} parent=1 // pred_region
      %108 = dma.done [#allocation6], 1024
    $region53: #{tpu_custom_call.1} parent=1 // pred_fallthru
      _
    // Predicated region
    $region54: #{tpu_custom_call.1} parent=1 // pred_check
      _
    $region55: #{tpu_custom_call.1} parent=1 // pred_check_branch
      %110 = sbr.rel (0) target = $region57
    $region56: #{tpu_custom_call.1} parent=1 // pred_region
      %111 = dma.done [#allocation6], 1024
    $region57: #{tpu_custom_call.1} parent=1 // pred_fallthru
      _
    // Predicated region
    $region58: #{tpu_custom_call.1} parent=1 // pred_check
      _
    $region59: #{tpu_custom_call.1} parent=1 // pred_check_branch
      %113 = sbr.rel (0) target = $region61
    $region60: #{tpu_custom_call.1} parent=1 // pred_region
      %114 = dma.done [#allocation9], 1024
    $region61: #{tpu_custom_call.1} parent=1 // pred_fallthru
      _
    // Predicated region
    $region62: #{tpu_custom_call.1} parent=1 // pred_check
      _
    $region63: #{tpu_custom_call.1} parent=1 // pred_check_branch
      %116 = sbr.rel (0) target = $region65
    $region64: #{tpu_custom_call.1} parent=1 // pred_region
      %117 = dma.done [#allocation9], 1024
    $region65: #{tpu_custom_call.1} parent=1 // pred_fallthru
      _
    // Predicated region
    $region66: #{tpu_custom_call.1} parent=1 // pred_check
      _
    $region67: #{tpu_custom_call.1} parent=1 // pred_check_branch
      %119 = sbr.rel (0) target = $region69
    $region68: #{tpu_custom_call.1} parent=1 // pred_region
      %120 = dma.done [#allocation12], 1024
    $region69: #{tpu_custom_call.1} parent=1 // pred_fallthru
      _
    %v122 = vld [vmem:[#allocation2] sm:$0xff]
    %v123 = vld [vmem:[#allocation2 + $0x8] sm:$0xff]
    %v124 = vpack.c.bf16 %v123, %v122
    %v125 = vld [vmem:[#allocation5] sm:$0xf]
    %v126 = vld [vmem:[#allocation5 + $0x4] sm:$0xf]
    %v127 = vld [vmem:[#allocation5 + $0x8] sm:$0xf]
    %v128 = vld [vmem:[#allocation5 + $0xc] sm:$0xf]
    %v129 = vld [vmem:[#allocation5 + $0x10] sm:$0xf]
    %v130 = vld [vmem:[#allocation5 + $0x14] sm:$0xf]
    %v131 = vld [vmem:[#allocation5 + $0x18] sm:$0xf]
    %v132 = vld [vmem:[#allocation5 + $0x1c] sm:$0xf]
    %v133 = vld [vmem:[#allocation5 + $0x20] sm:$0xf]
    %v134 = vld [vmem:[#allocation5 + $0x24] sm:$0xf]
    %v135 = vld [vmem:[#allocation5 + $0x28] sm:$0xf]
    %v136 = vld [vmem:[#allocation5 + $0x2c] sm:$0xf]
    %v137 = vld [vmem:[#allocation5 + $0x30] sm:$0xf]
    %v138 = vld [vmem:[#allocation5 + $0x34] sm:$0xf]
    %v139 = vld [vmem:[#allocation5 + $0x38] sm:$0xf]
    %v140 = vld [vmem:[#allocation5 + $0x3c] sm:$0xf]
    %v141 = vld [vmem:[%s2] sm:$0x1]
    %v143 = vlaneseq
    %v144 = vshrl.u32 %v143, 7
    %v145 = vsub.s32 0, %v144
    %v146 = vrot.slane %v141, %v145
    %v164 = vunpack.c.l.b16 %v125
    %v165 = vunpack.c.l.b16 %v126
    %v166 = vunpack.c.l.b16 %v127
    %v167 = vunpack.c.l.b16 %v128
    %v168 = vunpack.c.l.b16 %v129
    %v169 = vunpack.c.l.b16 %v130
    %v170 = vunpack.c.l.b16 %v131
    %v171 = vunpack.c.l.b16 %v132
    %v172 = vunpack.c.l.b16 %v133
    %v173 = vunpack.c.l.b16 %v134
    %v174 = vunpack.c.l.b16 %v135
    %v175 = vunpack.c.l.b16 %v136
    %v176 = vunpack.c.l.b16 %v137
    %v177 = vunpack.c.l.b16 %v138
    %v178 = vunpack.c.l.b16 %v139
    %v179 = vunpack.c.l.b16 %v140
    %v180 = vpack.c.b16 %v165, %v164
    %v181 = vpack.c.b16 %v167, %v166
    %v182 = vpack.c.b16 %v169, %v168
    %v183 = vpack.c.b16 %v171, %v170
    %v184 = vpack.c.b16 %v173, %v172
    %v185 = vpack.c.b16 %v175, %v174
    %v186 = vpack.c.b16 %v177, %v176
    %v187 = vpack.c.b16 %v179, %v178
    %196 = vmatprep.subr.bf16.mxu0 0
    %197 = vmatpush1.bf16.msra.mxu0 %v180
    %198 = vmatprep.subr.bf16.mxu0 0
    %199 = vmatpush1.bf16.msra.mxu0 %v181
    %200 = vmatprep.subr.bf16.mxu0 0
    %201 = vmatpush1.bf16.msra.mxu0 %v182
    %202 = vmatprep.subr.bf16.mxu0 0
    %203 = vmatpush1.bf16.msra.mxu0 %v183
    %204 = vmatprep.subr.bf16.mxu0 0
    %205 = vmatpush1.bf16.msra.mxu0 %v184
    %206 = vmatprep.subr.bf16.mxu0 0
    %207 = vmatpush1.bf16.msra.mxu0 %v185
    %208 = vmatprep.subr.bf16.mxu0 0
    %209 = vmatpush1.bf16.msra.mxu0 %v186
    %210 = vmatprep.subr.bf16.mxu0 0
    %211 = vmatpush1.bf16.msra.mxu0 %v187
    %212 = vmatprep.subr.bf16.mxu0 0
    %213 = vmatpush1.bf16.msra.mxu0 0
    %214 = vmatprep.subr.bf16.mxu0 0
    %215 = vmatpush1.bf16.msra.mxu0 0
    %216 = vmatprep.subr.bf16.mxu0 0
    %217 = vmatpush1.bf16.msra.mxu0 0
    %218 = vmatprep.subr.bf16.mxu0 0
    %219 = vmatpush1.bf16.msra.mxu0 0
    %220 = vmatprep.subr.bf16.mxu0 0
    %221 = vmatpush1.bf16.msra.mxu0 0
    %222 = vmatprep.subr.bf16.mxu0 0
    %223 = vmatpush1.bf16.msra.mxu0 0
    %224 = vmatprep.subr.bf16.mxu0 0
    %225 = vmatpush1.bf16.msra.mxu0 0
    %226 = vmatprep.subr.bf16.mxu0 0
    %227 = vmatpush1.bf16.msra.mxu0 0
    %228 = vmatprep.mubr.bf16.mxu0 0
    %229 = vmatmul.mubr.bf16.gmra.mrb[0].mxu0 %v124
    %v230 = vpop.f32.mrb[0].mxu0
    %v231 = vadd.f32 %v146, %v230
    %v232 = vpop.f32.mrb[0].mxu0
    %v233 = vpop.f32.mrb[0].mxu0
    %v234 = vadd.f32 %v146, %v233
    %v235 = vpop.f32.mrb[0].mxu0
    %236 = vdwg.mxu0
    %v237 = vmul.f32 %v231, 0.999995
    %v238 = vmul.f32 %v234, 0.999995
    %v239 = vmax.f32 %v237, 0.0
    %v240 = vmax.f32 %v238, 0.0
    %v241 = vpack.c.bf16 %v240, %v239
    %v242 = vld [vmem:[#allocation7] sm:$0xf]
    %v243 = vld [vmem:[#allocation7 + $0x4] sm:$0xf]
    %v244 = vld [vmem:[#allocation7 + $0x8] sm:$0xf]
    %v245 = vld [vmem:[#allocation7 + $0xc] sm:$0xf]
    %v246 = vld [vmem:[#allocation7 + $0x10] sm:$0xf]
    %v247 = vld [vmem:[#allocation7 + $0x14] sm:$0xf]
    %v248 = vld [vmem:[#allocation7 + $0x18] sm:$0xf]
    %v249 = vld [vmem:[#allocation7 + $0x1c] sm:$0xf]
    %v250 = vld [vmem:[#allocation7 + $0x20] sm:$0xf]
    %v251 = vld [vmem:[#allocation7 + $0x24] sm:$0xf]
    %v252 = vld [vmem:[#allocation7 + $0x28] sm:$0xf]
    %v253 = vld [vmem:[#allocation7 + $0x2c] sm:$0xf]
    %v254 = vld [vmem:[#allocation7 + $0x30] sm:$0xf]
    %v255 = vld [vmem:[#allocation7 + $0x34] sm:$0xf]
    %v256 = vld [vmem:[#allocation7 + $0x38] sm:$0xf]
    %v257 = vld [vmem:[#allocation7 + $0x3c] sm:$0xf]
    %v258 = vld [vmem:[%s4] sm:$0x1]
    %v260 = vlaneseq
    %v261 = vshrl.u32 %v260, 7
    %v262 = vsub.s32 0, %v261
    %v263 = vrot.slane %v258, %v262
    %v281 = vunpack.c.l.b16 %v242
    %v282 = vunpack.c.l.b16 %v243
    %v283 = vunpack.c.l.b16 %v244
    %v284 = vunpack.c.l.b16 %v245
    %v285 = vunpack.c.l.b16 %v246
    %v286 = vunpack.c.l.b16 %v247
    %v287 = vunpack.c.l.b16 %v248
    %v288 = vunpack.c.l.b16 %v249
    %v289 = vunpack.c.l.b16 %v250
    %v290 = vunpack.c.l.b16 %v251
    %v291 = vunpack.c.l.b16 %v252
    %v292 = vunpack.c.l.b16 %v253
    %v293 = vunpack.c.l.b16 %v254
    %v294 = vunpack.c.l.b16 %v255
    %v295 = vunpack.c.l.b16 %v256
    %v296 = vunpack.c.l.b16 %v257
    %v297 = vpack.c.b16 %v282, %v281
    %v298 = vpack.c.b16 %v284, %v283
    %v299 = vpack.c.b16 %v286, %v285
    %v300 = vpack.c.b16 %v288, %v287
    %v301 = vpack.c.b16 %v290, %v289
    %v302 = vpack.c.b16 %v292, %v291
    %v303 = vpack.c.b16 %v294, %v293
    %v304 = vpack.c.b16 %v296, %v295
    %313 = vmatprep.subr.bf16.mxu0 0
    %314 = vmatpush1.bf16.msra.mxu0 %v297
    %315 = vmatprep.subr.bf16.mxu0 0
    %316 = vmatpush1.bf16.msra.mxu0 %v298
    %317 = vmatprep.subr.bf16.mxu0 0
    %318 = vmatpush1.bf16.msra.mxu0 %v299
    %319 = vmatprep.subr.bf16.mxu0 0
    %320 = vmatpush1.bf16.msra.mxu0 %v300
    %321 = vmatprep.subr.bf16.mxu0 0
    %322 = vmatpush1.bf16.msra.mxu0 %v301
    %323 = vmatprep.subr.bf16.mxu0 0
    %324 = vmatpush1.bf16.msra.mxu0 %v302
    %325 = vmatprep.subr.bf16.mxu0 0
    %326 = vmatpush1.bf16.msra.mxu0 %v303
    %327 = vmatprep.subr.bf16.mxu0 0
    %328 = vmatpush1.bf16.msra.mxu0 %v304
    %329 = vmatprep.subr.bf16.mxu0 0
    %330 = vmatpush1.bf16.msra.mxu0 0
    %331 = vmatprep.subr.bf16.mxu0 0
    %332 = vmatpush1.bf16.msra.mxu0 0
    %333 = vmatprep.subr.bf16.mxu0 0
    %334 = vmatpush1.bf16.msra.mxu0 0
    %335 = vmatprep.subr.bf16.mxu0 0
    %336 = vmatpush1.bf16.msra.mxu0 0
    %337 = vmatprep.subr.bf16.mxu0 0
    %338 = vmatpush1.bf16.msra.mxu0 0
    %339 = vmatprep.subr.bf16.mxu0 0
    %340 = vmatpush1.bf16.msra.mxu0 0
    %341 = vmatprep.subr.bf16.mxu0 0
    %342 = vmatpush1.bf16.msra.mxu0 0
    %343 = vmatprep.subr.bf16.mxu0 0
    %344 = vmatpush1.bf16.msra.mxu0 0
    %345 = vmatprep.mubr.bf16.mxu0 0
    %346 = vmatmul.mubr.bf16.gmra.mrb[0].mxu0 %v241
    %v347 = vpop.f32.mrb[0].mxu0
    %v348 = vadd.f32 %v263, %v347
    %v349 = vpop.f32.mrb[0].mxu0
    %v350 = vpop.f32.mrb[0].mxu0
    %v351 = vadd.f32 %v263, %v350
    %v352 = vpop.f32.mrb[0].mxu0
    %353 = vdwg.mxu0
    %v354 = vmul.f32 %v348, 0.999995
    %v355 = vmul.f32 %v351, 0.999995
    %v356 = vmax.f32 %v354, 0.0
    %v357 = vmax.f32 %v355, 0.0
    %v358 = vpack.c.bf16 %v357, %v356
    %v359 = vld [vmem:[#allocation8] sm:$0xf]
    %v360 = vld [vmem:[#allocation8 + $0x4] sm:$0xf]
    %v361 = vld [vmem:[#allocation8 + $0x8] sm:$0xf]
    %v362 = vld [vmem:[#allocation8 + $0xc] sm:$0xf]
    %v363 = vld [vmem:[#allocation8 + $0x10] sm:$0xf]
    %v364 = vld [vmem:[#allocation8 + $0x14] sm:$0xf]
    %v365 = vld [vmem:[#allocation8 + $0x18] sm:$0xf]
    %v366 = vld [vmem:[#allocation8 + $0x1c] sm:$0xf]
    %v367 = vld [vmem:[#allocation8 + $0x20] sm:$0xf]
    %v368 = vld [vmem:[#allocation8 + $0x24] sm:$0xf]
    %v369 = vld [vmem:[#allocation8 + $0x28] sm:$0xf]
    %v370 = vld [vmem:[#allocation8 + $0x2c] sm:$0xf]
    %v371 = vld [vmem:[#allocation8 + $0x30] sm:$0xf]
    %v372 = vld [vmem:[#allocation8 + $0x34] sm:$0xf]
    %v373 = vld [vmem:[#allocation8 + $0x38] sm:$0xf]
    %v374 = vld [vmem:[#allocation8 + $0x3c] sm:$0xf]
    %v375 = vld [vmem:[%s6] sm:$0x1]
    %v377 = vlaneseq
    %v378 = vshrl.u32 %v377, 7
    %v379 = vsub.s32 0, %v378
    %v380 = vrot.slane %v375, %v379
    %v398 = vunpack.c.l.b16 %v359
    %v399 = vunpack.c.l.b16 %v360
    %v400 = vunpack.c.l.b16 %v361
    %v401 = vunpack.c.l.b16 %v362
    %v402 = vunpack.c.l.b16 %v363
    %v403 = vunpack.c.l.b16 %v364
    %v404 = vunpack.c.l.b16 %v365
    %v405 = vunpack.c.l.b16 %v366
    %v406 = vunpack.c.l.b16 %v367
    %v407 = vunpack.c.l.b16 %v368
    %v408 = vunpack.c.l.b16 %v369
    %v409 = vunpack.c.l.b16 %v370
    %v410 = vunpack.c.l.b16 %v371
    %v411 = vunpack.c.l.b16 %v372
    %v412 = vunpack.c.l.b16 %v373
    %v413 = vunpack.c.l.b16 %v374
    %v414 = vpack.c.b16 %v399, %v398
    %v415 = vpack.c.b16 %v401, %v400
    %v416 = vpack.c.b16 %v403, %v402
    %v417 = vpack.c.b16 %v405, %v404
    %v418 = vpack.c.b16 %v407, %v406
    %v419 = vpack.c.b16 %v409, %v408
    %v420 = vpack.c.b16 %v411, %v410
    %v421 = vpack.c.b16 %v413, %v412
    %430 = vmatprep.subr.bf16.mxu0 0
    %431 = vmatpush1.bf16.msra.mxu0 %v414
    %432 = vmatprep.subr.bf16.mxu0 0
    %433 = vmatpush1.bf16.msra.mxu0 %v415
    %434 = vmatprep.subr.bf16.mxu0 0
    %435 = vmatpush1.bf16.msra.mxu0 %v416
    %436 = vmatprep.subr.bf16.mxu0 0
    %437 = vmatpush1.bf16.msra.mxu0 %v417
    %438 = vmatprep.subr.bf16.mxu0 0
    %439 = vmatpush1.bf16.msra.mxu0 %v418
    %440 = vmatprep.subr.bf16.mxu0 0
    %441 = vmatpush1.bf16.msra.mxu0 %v419
    %442 = vmatprep.subr.bf16.mxu0 0
    %443 = vmatpush1.bf16.msra.mxu0 %v420
    %444 = vmatprep.subr.bf16.mxu0 0
    %445 = vmatpush1.bf16.msra.mxu0 %v421
    %446 = vmatprep.subr.bf16.mxu0 0
    %447 = vmatpush1.bf16.msra.mxu0 0
    %448 = vmatprep.subr.bf16.mxu0 0
    %449 = vmatpush1.bf16.msra.mxu0 0
    %450 = vmatprep.subr.bf16.mxu0 0
    %451 = vmatpush1.bf16.msra.mxu0 0
    %452 = vmatprep.subr.bf16.mxu0 0
    %453 = vmatpush1.bf16.msra.mxu0 0
    %454 = vmatprep.subr.bf16.mxu0 0
    %455 = vmatpush1.bf16.msra.mxu0 0
    %456 = vmatprep.subr.bf16.mxu0 0
    %457 = vmatpush1.bf16.msra.mxu0 0
    %458 = vmatprep.subr.bf16.mxu0 0
    %459 = vmatpush1.bf16.msra.mxu0 0
    %460 = vmatprep.subr.bf16.mxu0 0
    %461 = vmatpush1.bf16.msra.mxu0 0
    %462 = vmatprep.mubr.bf16.mxu0 0
    %463 = vmatmul.mubr.bf16.gmra.mrb[0].mxu0 %v358
    %v464 = vpop.f32.mrb[0].mxu0
    %v465 = vadd.f32 %v380, %v464
    %v466 = vpop.f32.mrb[0].mxu0
    %v467 = vpop.f32.mrb[0].mxu0
    %v468 = vadd.f32 %v380, %v467
    %v469 = vpop.f32.mrb[0].mxu0
    %470 = vdwg.mxu0
    %v471 = vmul.f32 %v465, 0.999995
    %v472 = vmul.f32 %v468, 0.999995
    %v473 = vmax.f32 %v471, 0.0
    %v474 = vmax.f32 %v472, 0.0
    %v475 = vpack.c.bf16 %v474, %v473
    %v476 = vld [vmem:[#allocation10] sm:$0xf]
    %v477 = vld [vmem:[#allocation10 + $0x4] sm:$0xf]
    %v478 = vld [vmem:[#allocation10 + $0x8] sm:$0xf]
    %v479 = vld [vmem:[#allocation10 + $0xc] sm:$0xf]
    %v480 = vld [vmem:[#allocation10 + $0x10] sm:$0xf]
    %v481 = vld [vmem:[#allocation10 + $0x14] sm:$0xf]
    %v482 = vld [vmem:[#allocation10 + $0x18] sm:$0xf]
    %v483 = vld [vmem:[#allocation10 + $0x1c] sm:$0xf]
    %v484 = vld [vmem:[#allocation10 + $0x20] sm:$0xf]
    %v485 = vld [vmem:[#allocation10 + $0x24] sm:$0xf]
    %v486 = vld [vmem:[#allocation10 + $0x28] sm:$0xf]
    %v487 = vld [vmem:[#allocation10 + $0x2c] sm:$0xf]
    %v488 = vld [vmem:[#allocation10 + $0x30] sm:$0xf]
    %v489 = vld [vmem:[#allocation10 + $0x34] sm:$0xf]
    %v490 = vld [vmem:[#allocation10 + $0x38] sm:$0xf]
    %v491 = vld [vmem:[#allocation10 + $0x3c] sm:$0xf]
    %v492 = vld [vmem:[%s8] sm:$0x1]
    %v494 = vlaneseq
    %v495 = vshrl.u32 %v494, 7
    %v496 = vsub.s32 0, %v495
    %v497 = vrot.slane %v492, %v496
    %v515 = vunpack.c.l.b16 %v476
    %v516 = vunpack.c.l.b16 %v477
    %v517 = vunpack.c.l.b16 %v478
    %v518 = vunpack.c.l.b16 %v479
    %v519 = vunpack.c.l.b16 %v480
    %v520 = vunpack.c.l.b16 %v481
    %v521 = vunpack.c.l.b16 %v482
    %v522 = vunpack.c.l.b16 %v483
    %v523 = vunpack.c.l.b16 %v484
    %v524 = vunpack.c.l.b16 %v485
    %v525 = vunpack.c.l.b16 %v486
    %v526 = vunpack.c.l.b16 %v487
    %v527 = vunpack.c.l.b16 %v488
    %v528 = vunpack.c.l.b16 %v489
    %v529 = vunpack.c.l.b16 %v490
    %v530 = vunpack.c.l.b16 %v491
    %v531 = vpack.c.b16 %v516, %v515
    %v532 = vpack.c.b16 %v518, %v517
    %v533 = vpack.c.b16 %v520, %v519
    %v534 = vpack.c.b16 %v522, %v521
    %v535 = vpack.c.b16 %v524, %v523
    %v536 = vpack.c.b16 %v526, %v525
    %v537 = vpack.c.b16 %v528, %v527
    %v538 = vpack.c.b16 %v530, %v529
    %547 = vmatprep.subr.bf16.mxu0 0
    %548 = vmatpush1.bf16.msra.mxu0 %v531
    %549 = vmatprep.subr.bf16.mxu0 0
    %550 = vmatpush1.bf16.msra.mxu0 %v532
    %551 = vmatprep.subr.bf16.mxu0 0
    %552 = vmatpush1.bf16.msra.mxu0 %v533
    %553 = vmatprep.subr.bf16.mxu0 0
    %554 = vmatpush1.bf16.msra.mxu0 %v534
    %555 = vmatprep.subr.bf16.mxu0 0
    %556 = vmatpush1.bf16.msra.mxu0 %v535
    %557 = vmatprep.subr.bf16.mxu0 0
    %558 = vmatpush1.bf16.msra.mxu0 %v536
    %559 = vmatprep.subr.bf16.mxu0 0
    %560 = vmatpush1.bf16.msra.mxu0 %v537
    %561 = vmatprep.subr.bf16.mxu0 0
    %562 = vmatpush1.bf16.msra.mxu0 %v538
    %563 = vmatprep.subr.bf16.mxu0 0
    %564 = vmatpush1.bf16.msra.mxu0 0
    %565 = vmatprep.subr.bf16.mxu0 0
    %566 = vmatpush1.bf16.msra.mxu0 0
    %567 = vmatprep.subr.bf16.mxu0 0
    %568 = vmatpush1.bf16.msra.mxu0 0
    %569 = vmatprep.subr.bf16.mxu0 0
    %570 = vmatpush1.bf16.msra.mxu0 0
    %571 = vmatprep.subr.bf16.mxu0 0
    %572 = vmatpush1.bf16.msra.mxu0 0
    %573 = vmatprep.subr.bf16.mxu0 0
    %574 = vmatpush1.bf16.msra.mxu0 0
    %575 = vmatprep.subr.bf16.mxu0 0
    %576 = vmatpush1.bf16.msra.mxu0 0
    %577 = vmatprep.subr.bf16.mxu0 0
    %578 = vmatpush1.bf16.msra.mxu0 0
    %579 = vmatprep.mubr.bf16.mxu0 0
    %580 = vmatmul.mubr.bf16.gmra.mrb[0].mxu0 %v475
    %v581 = vpop.f32.mrb[0].mxu0
    %v582 = vadd.f32 %v497, %v581
    %v583 = vpop.f32.mrb[0].mxu0
    %v584 = vpop.f32.mrb[0].mxu0
    %v585 = vadd.f32 %v497, %v584
    %v586 = vpop.f32.mrb[0].mxu0
    %587 = vdwg.mxu0
    %v588 = vmul.f32 %v582, 0.999995
    %v589 = vmul.f32 %v585, 0.999995
    %v590 = vmax.f32 %v588, 0.0
    %v591 = vmax.f32 %v589, 0.0
    %v592 = vpack.c.bf16 %v591, %v590
    %v593 = vld [vmem:[#allocation11] sm:$0xf]
    %v594 = vld [vmem:[#allocation11 + $0x4] sm:$0xf]
    %v595 = vld [vmem:[#allocation11 + $0x8] sm:$0xf]
    %v596 = vld [vmem:[#allocation11 + $0xc] sm:$0xf]
    %v597 = vld [vmem:[#allocation11 + $0x10] sm:$0xf]
    %v598 = vld [vmem:[#allocation11 + $0x14] sm:$0xf]
    %v599 = vld [vmem:[#allocation11 + $0x18] sm:$0xf]
    %v600 = vld [vmem:[#allocation11 + $0x1c] sm:$0xf]
    %v601 = vld [vmem:[#allocation11 + $0x20] sm:$0xf]
    %v602 = vld [vmem:[#allocation11 + $0x24] sm:$0xf]
    %v603 = vld [vmem:[#allocation11 + $0x28] sm:$0xf]
    %v604 = vld [vmem:[#allocation11 + $0x2c] sm:$0xf]
    %v605 = vld [vmem:[#allocation11 + $0x30] sm:$0xf]
    %v606 = vld [vmem:[#allocation11 + $0x34] sm:$0xf]
    %v607 = vld [vmem:[#allocation11 + $0x38] sm:$0xf]
    %v608 = vld [vmem:[#allocation11 + $0x3c] sm:$0xf]
    %v609 = vld [vmem:[%s10] sm:$0x1]
    %v611 = vlaneseq
    %v612 = vshrl.u32 %v611, 7
    %v613 = vsub.s32 0, %v612
    %v614 = vrot.slane %v609, %v613
    %v632 = vunpack.c.l.b16 %v593
    %v633 = vunpack.c.l.b16 %v594
    %v634 = vunpack.c.l.b16 %v595
    %v635 = vunpack.c.l.b16 %v596
    %v636 = vunpack.c.l.b16 %v597
    %v637 = vunpack.c.l.b16 %v598
    %v638 = vunpack.c.l.b16 %v599
    %v639 = vunpack.c.l.b16 %v600
    %v640 = vunpack.c.l.b16 %v601
    %v641 = vunpack.c.l.b16 %v602
    %v642 = vunpack.c.l.b16 %v603
    %v643 = vunpack.c.l.b16 %v604
    %v644 = vunpack.c.l.b16 %v605
    %v645 = vunpack.c.l.b16 %v606
    %v646 = vunpack.c.l.b16 %v607
    %v647 = vunpack.c.l.b16 %v608
    %v648 = vpack.c.b16 %v633, %v632
    %v649 = vpack.c.b16 %v635, %v634
    %v650 = vpack.c.b16 %v637, %v636
    %v651 = vpack.c.b16 %v639, %v638
    %v652 = vpack.c.b16 %v641, %v640
    %v653 = vpack.c.b16 %v643, %v642
    %v654 = vpack.c.b16 %v645, %v644
    %v655 = vpack.c.b16 %v647, %v646
    %664 = vmatprep.subr.bf16.mxu0 0
    %665 = vmatpush1.bf16.msra.mxu0 %v648
    %666 = vmatprep.subr.bf16.mxu0 0
    %667 = vmatpush1.bf16.msra.mxu0 %v649
    %668 = vmatprep.subr.bf16.mxu0 0
    %669 = vmatpush1.bf16.msra.mxu0 %v650
    %670 = vmatprep.subr.bf16.mxu0 0
    %671 = vmatpush1.bf16.msra.mxu0 %v651
    %672 = vmatprep.subr.bf16.mxu0 0
    %673 = vmatpush1.bf16.msra.mxu0 %v652
    %674 = vmatprep.subr.bf16.mxu0 0
    %675 = vmatpush1.bf16.msra.mxu0 %v653
    %676 = vmatprep.subr.bf16.mxu0 0
    %677 = vmatpush1.bf16.msra.mxu0 %v654
    %678 = vmatprep.subr.bf16.mxu0 0
    %679 = vmatpush1.bf16.msra.mxu0 %v655
    %680 = vmatprep.subr.bf16.mxu0 0
    %681 = vmatpush1.bf16.msra.mxu0 0
    %682 = vmatprep.subr.bf16.mxu0 0
    %683 = vmatpush1.bf16.msra.mxu0 0
    %684 = vmatprep.subr.bf16.mxu0 0
    %685 = vmatpush1.bf16.msra.mxu0 0
    %686 = vmatprep.subr.bf16.mxu0 0
    %687 = vmatpush1.bf16.msra.mxu0 0
    %688 = vmatprep.subr.bf16.mxu0 0
    %689 = vmatpush1.bf16.msra.mxu0 0
    %690 = vmatprep.subr.bf16.mxu0 0
    %691 = vmatpush1.bf16.msra.mxu0 0
    %692 = vmatprep.subr.bf16.mxu0 0
    %693 = vmatpush1.bf16.msra.mxu0 0
    %694 = vmatprep.subr.bf16.mxu0 0
    %695 = vmatpush1.bf16.msra.mxu0 0
    %696 = vmatprep.mubr.bf16.mxu0 0
    %697 = vmatmul.mubr.bf16.gmra.mrb[0].mxu0 %v592
    %v698 = vpop.f32.mrb[0].mxu0
    %v699 = vadd.f32 %v614, %v698
    %v700 = vpop.f32.mrb[0].mxu0
    %v701 = vpop.f32.mrb[0].mxu0
    %v702 = vadd.f32 %v614, %v701
    %v703 = vpop.f32.mrb[0].mxu0
    %704 = vdwg.mxu0
    %705 = vst [vmem:[#allocation13] sm:$0xff] %v699
    %706 = vst [vmem:[#allocation13 + $0x8] sm:$0xff] %v702
    // Predicated region
    $region70: #{tpu_custom_call.1} parent=1 // pred_check
      _
    $region71: #{tpu_custom_call.1} parent=1 // pred_check_branch
      %708 = sbr.rel (0) target = $region73
    $region72: #{tpu_custom_call.1} parent=1 // pred_region
      %s710 = ssub.s32 256, 256
      %711 = vsyncadd [#allocation4], %s710
      %s712 = sshll.u32 [#allocation13], 4
      %s713 = int_to_ptr.vmem [resolvable:$true] %s712
      %718 = dma.vmem_to_hbm [thread:$0]  %s713, 256, %s11, [#allocation4], 128, 128, 8
    $region73: #{tpu_custom_call.1} parent=1 // pred_fallthru
      _
    // Predicated region
    $region74: #{tpu_custom_call.1} parent=1 // pred_check
      _
    $region75: #{tpu_custom_call.1} parent=1 // pred_check_branch
      %720 = sbr.rel (0) target = $region77
    $region76: #{tpu_custom_call.1} parent=1 // pred_region
      %721 = dma.done [#allocation4], 256
    $region77: #{tpu_custom_call.1} parent=1 // pred_fallthru
      _
    %722 = vsyncpa [#allocation3], 1
    %723 = vsyncpa [#allocation6], 1
    %724 = vsyncpa [#allocation9], 1
    %725 = vsyncpa [#allocation12], 1
    %726 = vsyncpa [#allocation4], 1

</llo_original>
